<compile_context>
chip_gen: v5e
topology: v5e:2x2
jax: 0.10.0
libtpu: 0.0.40
codegen_flags: <defaults>
</compile_context>

<pallas_src>
import jax
import jax.numpy as jnp
from jax.experimental import pallas as pl
from jax.experimental.pallas import tpu as pltpu

NUM_CLASSES = 5749  # matches the hard-coded 5749 in the PyTorch module


def _make_ce_rows_kernel(batch_size, tile_rows):
    def _ce_rows_kernel(x_ref, lab_ref, ce_ref):
        # x_ref:   (TB, C) float32 VMEM logits
        # lab_ref: (TB, 1) int32   VMEM labels
        # ce_ref:  (TB, 1) float32 VMEM per-row log-prob of the true class
        x = x_ref[...].astype(jnp.float32)
        lab = lab_ref[...]
        tb, c = x.shape

        # denominator of the naive softmax: sum(exp(x)) per row (EUP + XLU)
        denom = jnp.sum(jnp.exp(x), axis=1, keepdims=True)            # (TB, 1)

        # x[label] via a lane-iota one-hot select on the raw logits (VPU only)
        col = jax.lax.broadcasted_iota(jnp.int32, (tb, c), 1)
        one_hot = col == lab                                          # (TB, C)
        x_lab = jnp.sum(jnp.where(one_hot, x, 0.0), axis=1, keepdims=True)

        # sum(one_hot * log(softmax)) == x[label] - log(sum(exp(x)))
        ce = x_lab - jnp.log(denom)                                   # (TB, 1)

        # Zero out rows of the last partial tile that lie beyond the true
        # batch, so garbage-derived Inf/NaN can never reach the final sum.
        row0 = pl.program_id(0) * tile_rows
        row = row0 + jax.lax.broadcasted_iota(jnp.int32, (tb, 1), 0)
        ce_ref[...] = jnp.where(row < batch_size, ce, 0.0)

    return _ce_rows_kernel


def ce_loss(x, label, *, tb=512):
    """x: (B, NUM_CLASSES) float logits, label: (B,) int. Returns (1,) f32 loss."""
    b, c = x.shape
    x = x.astype(jnp.float32)
    lab = label.astype(jnp.int32).reshape(b, 1)

    if b <= tb:
        tb = b  # block == full batch dim (always a legal block shape)
    num_tiles = pl.cdiv(b, tb)

    ce_rows = pl.pallas_call(
        _make_ce_rows_kernel(b, tb),
        out_shape=jax.ShapeDtypeStruct((b, 1), jnp.float32),
        grid=(num_tiles,),
        in_specs=[
            pl.BlockSpec((tb, c), lambda i: (i, 0)),   # class axis kept whole
            pl.BlockSpec((tb, 1), lambda i: (i, 0)),
        ],
        out_specs=pl.BlockSpec((tb, 1), lambda i: (i, 0)),
        compiler_params=pltpu.CompilerParams(
            dimension_semantics=("parallel",),
            vmem_limit_bytes=40 * 1024 * 1024,
        ),
    )(x, lab)

    # tiny final reduction outside the kernel: -mean over the true batch size
    return (-jnp.sum(ce_rows) / b).reshape(1)


def _ce_loss_ref(x, label):
    # Pure-JAX reference mirroring the naive PyTorch forward.
    one_hot = jax.nn.one_hot(label, NUM_CLASSES, dtype=jnp.float32)
    sm = jnp.exp(x) / jnp.sum(jnp.exp(x), axis=1, keepdims=True)
    ce = jnp.sum(one_hot * jnp.log(sm), axis=1)
    return jnp.array([-ce.mean()], dtype=jnp.float32)


if __name__ == "__main__":
    key = jax.random.PRNGKey(0)
    kx, kl = jax.random.split(key)
    B = 8
    x = jax.random.normal(kx, (B, NUM_CLASSES), dtype=jnp.float32)
    label = jax.random.randint(kl, (B,), 0, NUM_CLASSES, dtype=jnp.int32)

    loss = jax.block_until_ready(ce_loss(x, label))
    ref = _ce_loss_ref(x, label)
    assert loss.shape == (1,)
    assert jnp.allclose(loss, ref, rtol=1e-5, atol=1e-5), (loss, ref)
    print("KERNEL_OK")
</pallas_src>

<mosaic_0001>
module attributes {stable_mosaic.version = 11 : i64} {
  func.func @_ce_rows_kernel(%arg0: i32, %arg1: memref<8x5749xf32, #tpu.memory_space<vmem>>, %arg2: memref<8x1xi32, #tpu.memory_space<vmem>>, %arg3: memref<8x1xf32, #tpu.memory_space<vmem>>) attributes {dimension_semantics = [#tpu.dimension_semantics<parallel>], iteration_bounds = array<i64: 1>, scalar_prefetch = 0 : i64, scratch_operands = 0 : i64, tpu.core_type = #tpu.core_type<tc>, window_params = [{transform_indices = @transform_0, window_bounds = array<i64: 8, 5749>}, {transform_indices = @transform_1, window_bounds = array<i64: 8, 1>}, {transform_indices = @transform_2, window_bounds = array<i64: 8, 1>}]} {
    %c0 = arith.constant 0 : index
    %c0_0 = arith.constant 0 : index
    %0 = vector.load %arg1[%c0, %c0_0] : memref<8x5749xf32, #tpu.memory_space<vmem>>, vector<8x5749xf32>
    %c0_1 = arith.constant 0 : index
    %c0_2 = arith.constant 0 : index
    %1 = vector.load %arg2[%c0_1, %c0_2] : memref<8x1xi32, #tpu.memory_space<vmem>>, vector<8x1xi32>
    %2 = math.exp %0 : vector<8x5749xf32>
    %cst = arith.constant dense<0.000000e+00> : vector<8xf32>
    %3 = vector.multi_reduction <add>, %2, %cst [1] : vector<8x5749xf32> to vector<8xf32>
    %4 = vector.shape_cast %3 : vector<8xf32> to vector<8x1xf32>
    %5 = tpu.iota {dimensions = array<i32: 1>} : vector<8x5749xi32>
    %6 = vector.broadcast %1 : vector<8x1xi32> to vector<8x5749xi32>
    %7 = arith.cmpi eq, %5, %6 : vector<8x5749xi32>
    %cst_3 = arith.constant 0.000000e+00 : f32
    %8 = vector.broadcast %cst_3 : f32 to vector<8x5749xf32>
    %9 = arith.select %7, %0, %8 : vector<8x5749xi1>, vector<8x5749xf32>
    %cst_4 = arith.constant dense<0.000000e+00> : vector<8xf32>
    %10 = vector.multi_reduction <add>, %9, %cst_4 [1] : vector<8x5749xf32> to vector<8xf32>
    %11 = vector.shape_cast %10 : vector<8xf32> to vector<8x1xf32>
    %12 = math.log %4 : vector<8x1xf32>
    %13 = arith.subf %11, %12 : vector<8x1xf32>
    %c8_i32 = arith.constant 8 : i32
    %14 = arith.muli %arg0, %c8_i32 : i32
    %15 = tpu.iota {dimensions = array<i32: 0>} : vector<8x1xi32>
    %16 = vector.broadcast %14 : i32 to vector<8x1xi32>
    %17 = arith.addi %16, %15 : vector<8x1xi32>
    %c8_i32_5 = arith.constant 8 : i32
    %18 = vector.broadcast %c8_i32_5 : i32 to vector<8x1xi32>
    %19 = arith.cmpi slt, %17, %18 : vector<8x1xi32>
    %cst_6 = arith.constant 0.000000e+00 : f32
    %20 = vector.broadcast %cst_6 : f32 to vector<8x1xf32>
    %21 = arith.select %19, %13, %20 : vector<8x1xi1>, vector<8x1xf32>
    %c0_7 = arith.constant 0 : index
    %c0_8 = arith.constant 0 : index
    %22 = vector.load %arg3[%c0_7, %c0_8] : memref<8x1xf32, #tpu.memory_space<vmem>>, vector<8x1xf32>
    tpu.vector_store %arg3[%c0_7, %c0_8], %21 {strides = array<i32>} : memref<8x1xf32, #tpu.memory_space<vmem>>, vector<8x1xf32>,
    return
  }
  func.func @transform_0(%arg0: i32) -> (i32, i32) {
    %c0_i32 = arith.constant 0 : i32
    %c0_i32_0 = arith.constant 0 : i32
    return %arg0, %c0_i32 : i32, i32
  }
  func.func @transform_1(%arg0: i32) -> (i32, i32) {
    %c0_i32 = arith.constant 0 : i32
    %c0_i32_0 = arith.constant 0 : i32
    return %arg0, %c0_i32 : i32, i32
  }
  func.func @transform_2(%arg0: i32) -> (i32, i32) {
    %c0_i32 = arith.constant 0 : i32
    %c0_i32_0 = arith.constant 0 : i32
    return %arg0, %c0_i32 : i32, i32
  }
}

</mosaic_0001>

<llo_original>
// kernel: tpu_custom_call.1
$region0: #{tpu_custom_call.1}
  #allocation0 [shape = 'u32[]', space=smem, size = 0x4, offset = 0x4, fixed_abs, tag = 'smem constant byte address 0x4 - core index']
  #allocation1 [shape = 'u32[72,128]{1,0:T(1,128)}', space=vmem, size = 0x9000, scoped, tag = 'internal scratch']
  %s0 = inlined_call_operand.hbm [shape: f32[8,5749], index: 0, kind: input, shape index: {}]
  %s1 = inlined_call_operand.vmem [shape: s32[8,1], index: 1, kind: input, shape index: {}]
  %s2 = inlined_call_operand.vmem [shape: f32[8,1], index: 2, kind: output, shape index: {}]
  %s3 = sld [smem:[#allocation0]]
  $region22: #{tpu_custom_call.1} parent=0
    _
  %s5 = ssub.s32 1, %s3
  %s6 = scalar_select 0, %s5, %s3
  $region1: #{tpu_custom_call.1} parent=0
    #allocation2 [shape = 'u8[184320]{0}', space=vmem, size = 0x2d000, scoped, tag = 'input window, operand 0, single buffered']
    #allocation3 [shape = 's32[1]{0}', space=sflag, size = 0x4, scoped, tag = 'scoped memory for tpu_custom_call.1']
    %7 = vsyncpa [#allocation3], 0
    // Predicated region
    $region2: #{tpu_custom_call.1} parent=1 // pred_check
      _
    $region3: #{tpu_custom_call.1} parent=1 // pred_check_branch
      %9 = sbr.rel (0) target = $region5
    $region4: #{tpu_custom_call.1} parent=1 // pred_region
      %11 = vsyncadd [#allocation3], 0
      %s13 = sshll.u32 %s0, 4
      %s14 = int_to_ptr.hbm [resolvable:$true] %s13
      %s15 = sshll.u32 [#allocation2], 4
      %s16 = int_to_ptr.vmem [resolvable:$true] %s15
      %18 = dma.hbm_to_vmem [thread:$0]  %s14, 5760, %s16, [#allocation3]
    $region5: #{tpu_custom_call.1} parent=1 // pred_fallthru
      _
    // Predicated region
    $region6: #{tpu_custom_call.1} parent=1 // pred_check
      _
    $region7: #{tpu_custom_call.1} parent=1 // pred_check_branch
      %20 = sbr.rel (0) target = $region9
    $region8: #{tpu_custom_call.1} parent=1 // pred_region
      _
    $region9: #{tpu_custom_call.1} parent=1 // pred_fallthru
      _
    // Predicated region
    $region10: #{tpu_custom_call.1} parent=1 // pred_check
      _
    $region11: #{tpu_custom_call.1} parent=1 // pred_check_branch
      %22 = sbr.rel (0) target = $region13
    $region12: #{tpu_custom_call.1} parent=1 // pred_region
      %24 = dma.done [#allocation3], 5760
    $region13: #{tpu_custom_call.1} parent=1 // pred_fallthru
      _
    %v25 = vld [vmem:[#allocation2] sm:$0xff]
    %v26 = vld [vmem:[#allocation2 + $0x8] sm:$0xff]
    %v27 = vld [vmem:[#allocation2 + $0x10] sm:$0xff]
    %v28 = vld [vmem:[#allocation2 + $0x18] sm:$0xff]
    %v29 = vld [vmem:[#allocation2 + $0x20] sm:$0xff]
    %v30 = vld [vmem:[#allocation2 + $0x28] sm:$0xff]
    %v31 = vld [vmem:[#allocation2 + $0x30] sm:$0xff]
    %v32 = vld [vmem:[#allocation2 + $0x38] sm:$0xff]
    %v33 = vld [vmem:[#allocation2 + $0x40] sm:$0xff]
    %v34 = vld [vmem:[#allocation2 + $0x48] sm:$0xff]
    %v35 = vld [vmem:[#allocation2 + $0x50] sm:$0xff]
    %v36 = vld [vmem:[#allocation2 + $0x58] sm:$0xff]
    %v37 = vld [vmem:[#allocation2 + $0x60] sm:$0xff]
    %v38 = vld [vmem:[#allocation2 + $0x68] sm:$0xff]
    %v39 = vld [vmem:[#allocation2 + $0x70] sm:$0xff]
    %v40 = vld [vmem:[#allocation2 + $0x78] sm:$0xff]
    %v41 = vld [vmem:[#allocation2 + $0x80] sm:$0xff]
    %v42 = vld [vmem:[#allocation2 + $0x88] sm:$0xff]
    %v43 = vld [vmem:[#allocation2 + $0x90] sm:$0xff]
    %v44 = vld [vmem:[#allocation2 + $0x98] sm:$0xff]
    %v45 = vld [vmem:[#allocation2 + $0xa0] sm:$0xff]
    %v46 = vld [vmem:[#allocation2 + $0xa8] sm:$0xff]
    %v47 = vld [vmem:[#allocation2 + $0xb0] sm:$0xff]
    %v48 = vld [vmem:[#allocation2 + $0xb8] sm:$0xff]
    %v49 = vld [vmem:[#allocation2 + $0xc0] sm:$0xff]
    %v50 = vld [vmem:[#allocation2 + $0xc8] sm:$0xff]
    %v51 = vld [vmem:[#allocation2 + $0xd0] sm:$0xff]
    %v52 = vld [vmem:[#allocation2 + $0xd8] sm:$0xff]
    %v53 = vld [vmem:[#allocation2 + $0xe0] sm:$0xff]
    %v54 = vld [vmem:[#allocation2 + $0xe8] sm:$0xff]
    %v55 = vld [vmem:[#allocation2 + $0xf0] sm:$0xff]
    %v56 = vld [vmem:[#allocation2 + $0xf8] sm:$0xff]
    %v57 = vld [vmem:[#allocation2 + $0x100] sm:$0xff]
    %v58 = vld [vmem:[#allocation2 + $0x108] sm:$0xff]
    %v59 = vld [vmem:[#allocation2 + $0x110] sm:$0xff]
    %v60 = vld [vmem:[#allocation2 + $0x118] sm:$0xff]
    %v61 = vld [vmem:[#allocation2 + $0x120] sm:$0xff]
    %v62 = vld [vmem:[#allocation2 + $0x128] sm:$0xff]
    %v63 = vld [vmem:[#allocation2 + $0x130] sm:$0xff]
    %v64 = vld [vmem:[#allocation2 + $0x138] sm:$0xff]
    %v65 = vld [vmem:[#allocation2 + $0x140] sm:$0xff]
    %v66 = vld [vmem:[#allocation2 + $0x148] sm:$0xff]
    %v67 = vld [vmem:[#allocation2 + $0x150] sm:$0xff]
    %v68 = vld [vmem:[#allocation2 + $0x158] sm:$0xff]
    %v69 = vld [vmem:[#allocation2 + $0x160] sm:$0xff]
    %v70 = vld [vmem:[%s1] sm:$0xff]
    %v71 = vmul.f32 %v25, 1.442695
    %v72 = vpow.pop %v71
    %v73 = vmul.f32 %v26, 1.442695
    %v74 = vpow.pop %v73
    %v75 = vmul.f32 %v27, 1.442695
    %v76 = vpow.pop %v75
    %v77 = vmul.f32 %v28, 1.442695
    %v78 = vpow.pop %v77
    %v79 = vmul.f32 %v29, 1.442695
    %v80 = vpow.pop %v79
    %v81 = vmul.f32 %v30, 1.442695
    %v82 = vpow.pop %v81
    %v83 = vmul.f32 %v31, 1.442695
    %v84 = vpow.pop %v83
    %v85 = vmul.f32 %v32, 1.442695
    %v86 = vpow.pop %v85
    %v87 = vmul.f32 %v33, 1.442695
    %v88 = vpow.pop %v87
    %v89 = vmul.f32 %v34, 1.442695
    %v90 = vpow.pop %v89
    %v91 = vmul.f32 %v35, 1.442695
    %v92 = vpow.pop %v91
    %v93 = vmul.f32 %v36, 1.442695
    %v94 = vpow.pop %v93
    %v95 = vmul.f32 %v37, 1.442695
    %v96 = vpow.pop %v95
    %v97 = vmul.f32 %v38, 1.442695
    %v98 = vpow.pop %v97
    %v99 = vmul.f32 %v39, 1.442695
    %v100 = vpow.pop %v99
    %v101 = vmul.f32 %v40, 1.442695
    %v102 = vpow.pop %v101
    %v103 = vmul.f32 %v41, 1.442695
    %v104 = vpow.pop %v103
    %v105 = vmul.f32 %v42, 1.442695
    %v106 = vpow.pop %v105
    %v107 = vmul.f32 %v43, 1.442695
    %v108 = vpow.pop %v107
    %v109 = vmul.f32 %v44, 1.442695
    %v110 = vpow.pop %v109
    %v111 = vmul.f32 %v45, 1.442695
    %v112 = vpow.pop %v111
    %v113 = vmul.f32 %v46, 1.442695
    %v114 = vpow.pop %v113
    %v115 = vmul.f32 %v47, 1.442695
    %v116 = vpow.pop %v115
    %v117 = vmul.f32 %v48, 1.442695
    %v118 = vpow.pop %v117
    %v119 = vmul.f32 %v49, 1.442695
    %v120 = vpow.pop %v119
    %v121 = vmul.f32 %v50, 1.442695
    %v122 = vpow.pop %v121
    %v123 = vmul.f32 %v51, 1.442695
    %v124 = vpow.pop %v123
    %v125 = vmul.f32 %v52, 1.442695
    %v126 = vpow.pop %v125
    %v127 = vmul.f32 %v53, 1.442695
    %v128 = vpow.pop %v127
    %v129 = vmul.f32 %v54, 1.442695
    %v130 = vpow.pop %v129
    %v131 = vmul.f32 %v55, 1.442695
    %v132 = vpow.pop %v131
    %v133 = vmul.f32 %v56, 1.442695
    %v134 = vpow.pop %v133
    %v135 = vmul.f32 %v57, 1.442695
    %v136 = vpow.pop %v135
    %v137 = vmul.f32 %v58, 1.442695
    %v138 = vpow.pop %v137
    %v139 = vmul.f32 %v59, 1.442695
    %v140 = vpow.pop %v139
    %v141 = vmul.f32 %v60, 1.442695
    %v142 = vpow.pop %v141
    %v143 = vmul.f32 %v61, 1.442695
    %v144 = vpow.pop %v143
    %v145 = vmul.f32 %v62, 1.442695
    %v146 = vpow.pop %v145
    %v147 = vmul.f32 %v63, 1.442695
    %v148 = vpow.pop %v147
    %v149 = vmul.f32 %v64, 1.442695
    %v150 = vpow.pop %v149
    %v151 = vmul.f32 %v65, 1.442695
    %v152 = vpow.pop %v151
    %v153 = vmul.f32 %v66, 1.442695
    %v154 = vpow.pop %v153
    %v155 = vmul.f32 %v67, 1.442695
    %v156 = vpow.pop %v155
    %v157 = vmul.f32 %v68, 1.442695
    %v158 = vpow.pop %v157
    %v159 = vmul.f32 %v69, 1.442695
    %v160 = vpow.pop %v159
    %v161 = vadd.f32 %v72, %v74
    %v162 = vadd.f32 %v161, %v76
    %v163 = vadd.f32 %v162, %v78
    %v164 = vadd.f32 %v163, %v80
    %v165 = vadd.f32 %v164, %v82
    %v166 = vadd.f32 %v165, %v84
    %v167 = vadd.f32 %v166, %v86
    %v168 = vadd.f32 %v167, %v88
    %v169 = vadd.f32 %v168, %v90
    %v170 = vadd.f32 %v169, %v92
    %v171 = vadd.f32 %v170, %v94
    %v172 = vadd.f32 %v171, %v96
    %v173 = vadd.f32 %v172, %v98
    %v174 = vadd.f32 %v173, %v100
    %v175 = vadd.f32 %v174, %v102
    %v176 = vadd.f32 %v175, %v104
    %v177 = vadd.f32 %v176, %v106
    %v178 = vadd.f32 %v177, %v108
    %v179 = vadd.f32 %v178, %v110
    %v180 = vadd.f32 %v179, %v112
    %v181 = vadd.f32 %v180, %v114
    %v182 = vadd.f32 %v181, %v116
    %v183 = vadd.f32 %v182, %v118
    %v184 = vadd.f32 %v183, %v120
    %v185 = vadd.f32 %v184, %v122
    %v186 = vadd.f32 %v185, %v124
    %v187 = vadd.f32 %v186, %v126
    %v188 = vadd.f32 %v187, %v128
    %v189 = vadd.f32 %v188, %v130
    %v190 = vadd.f32 %v189, %v132
    %v191 = vadd.f32 %v190, %v134
    %v192 = vadd.f32 %v191, %v136
    %v193 = vadd.f32 %v192, %v138
    %v194 = vadd.f32 %v193, %v140
    %v195 = vadd.f32 %v194, %v142
    %v196 = vadd.f32 %v195, %v144
    %v197 = vadd.f32 %v196, %v146
    %v198 = vadd.f32 %v197, %v148
    %v199 = vadd.f32 %v198, %v150
    %v200 = vadd.f32 %v199, %v152
    %v201 = vadd.f32 %v200, %v154
    %v202 = vadd.f32 %v201, %v156
    %v203 = vadd.f32 %v202, %v158
    %vm204 = vcmask 957440
    %v205 = vsel %vm204, %v160, 0.0
    %v206 = vadd.f32 %v203, %v205
    %207 = vadd.xlane.f32.xlu0 %v206
    %v208 = vpop.xlane.xlu0 %207
    %v209 = vlaneseq
    %v210 = vand.u32 %v209, 127
    %v211 = vadd.s32 %v210, 128
    %v212 = vadd.s32 %v210, 256
    %v213 = vadd.s32 %v210, 384
    %v214 = vadd.s32 %v210, 512
    %v215 = vadd.s32 %v210, 640
    %v216 = vadd.s32 %v210, 768
    %v217 = vadd.s32 %v210, 896
    %v218 = vadd.s32 %v210, 1024
    %v219 = vadd.s32 %v210, 1152
    %v220 = vadd.s32 %v210, 1280
    %v221 = vadd.s32 %v210, 1408
    %v222 = vadd.s32 %v210, 1536
    %v223 = vadd.s32 %v210, 1664
    %v224 = vadd.s32 %v210, 1792
    %v225 = vadd.s32 %v210, 1920
    %v226 = vadd.s32 %v210, 2048
    %v227 = vadd.s32 %v210, 2176
    %v228 = vadd.s32 %v210, 2304
    %v229 = vadd.s32 %v210, 2432
    %v230 = vadd.s32 %v210, 2560
    %v231 = vadd.s32 %v210, 2688
    %v232 = vadd.s32 %v210, 2816
    %v233 = vadd.s32 %v210, 2944
    %v234 = vadd.s32 %v210, 3072
    %v235 = vadd.s32 %v210, 3200
    %v236 = vadd.s32 %v210, 3328
    %v237 = vadd.s32 %v210, 3456
    %v238 = vadd.s32 %v210, 3584
    %v239 = vadd.s32 %v210, 3712
    %v240 = vadd.s32 %v210, 3840
    %v241 = vadd.s32 %v210, 3968
    %v242 = vadd.s32 %v210, 4096
    %v243 = vadd.s32 %v210, 4224
    %v244 = vadd.s32 %v210, 4352
    %v245 = vadd.s32 %v210, 4480
    %v246 = vadd.s32 %v210, 4608
    %v247 = vadd.s32 %v210, 4736
    %v248 = vadd.s32 %v210, 4864
    %v249 = vadd.s32 %v210, 4992
    %v250 = vadd.s32 %v210, 5120
    %v251 = vadd.s32 %v210, 5248
    %v252 = vadd.s32 %v210, 5376
    %v253 = vadd.s32 %v210, 5504
    %v254 = vadd.s32 %v210, 5632
    %255 = vset.pattern.permute.xlu0 0
    %256 = vperm.xlu0 %255, %v70
    %v257 = vpop.permute.xlu0 %256
    %vm258 = vcmp.eq.s32.totalorder %v210, %v257
    %vm259 = vcmp.eq.s32.totalorder %v211, %v257
    %vm260 = vcmp.eq.s32.totalorder %v212, %v257
    %vm261 = vcmp.eq.s32.totalorder %v213, %v257
    %vm262 = vcmp.eq.s32.totalorder %v214, %v257
    %vm263 = vcmp.eq.s32.totalorder %v215, %v257
    %vm264 = vcmp.eq.s32.totalorder %v216, %v257
    %vm265 = vcmp.eq.s32.totalorder %v217, %v257
    %vm266 = vcmp.eq.s32.totalorder %v218, %v257
    %vm267 = vcmp.eq.s32.totalorder %v219, %v257
    %vm268 = vcmp.eq.s32.totalorder %v220, %v257
    %vm269 = vcmp.eq.s32.totalorder %v221, %v257
    %vm270 = vcmp.eq.s32.totalorder %v222, %v257
    %vm271 = vcmp.eq.s32.totalorder %v223, %v257
    %vm272 = vcmp.eq.s32.totalorder %v224, %v257
    %vm273 = vcmp.eq.s32.totalorder %v225, %v257
    %vm274 = vcmp.eq.s32.totalorder %v226, %v257
    %vm275 = vcmp.eq.s32.totalorder %v227, %v257
    %vm276 = vcmp.eq.s32.totalorder %v228, %v257
    %vm277 = vcmp.eq.s32.totalorder %v229, %v257
    %vm278 = vcmp.eq.s32.totalorder %v230, %v257
    %vm279 = vcmp.eq.s32.totalorder %v231, %v257
    %vm280 = vcmp.eq.s32.totalorder %v232, %v257
    %vm281 = vcmp.eq.s32.totalorder %v233, %v257
    %vm282 = vcmp.eq.s32.totalorder %v234, %v257
    %vm283 = vcmp.eq.s32.totalorder %v235, %v257
    %vm284 = vcmp.eq.s32.totalorder %v236, %v257
    %vm285 = vcmp.eq.s32.totalorder %v237, %v257
    %vm286 = vcmp.eq.s32.totalorder %v238, %v257
    %vm287 = vcmp.eq.s32.totalorder %v239, %v257
    %vm288 = vcmp.eq.s32.totalorder %v240, %v257
    %vm289 = vcmp.eq.s32.totalorder %v241, %v257
    %vm290 = vcmp.eq.s32.totalorder %v242, %v257
    %vm291 = vcmp.eq.s32.totalorder %v243, %v257
    %vm292 = vcmp.eq.s32.totalorder %v244, %v257
    %vm293 = vcmp.eq.s32.totalorder %v245, %v257
    %vm294 = vcmp.eq.s32.totalorder %v246, %v257
    %vm295 = vcmp.eq.s32.totalorder %v247, %v257
    %vm296 = vcmp.eq.s32.totalorder %v248, %v257
    %vm297 = vcmp.eq.s32.totalorder %v249, %v257
    %vm298 = vcmp.eq.s32.totalorder %v250, %v257
    %vm299 = vcmp.eq.s32.totalorder %v251, %v257
    %vm300 = vcmp.eq.s32.totalorder %v252, %v257
    %vm301 = vcmp.eq.s32.totalorder %v253, %v257
    %vm302 = vcmp.eq.s32.totalorder %v254, %v257
    %v303 = vsel %vm258, %v25, 0.0
    %v304 = vsel %vm259, %v26, 0.0
    %v305 = vsel %vm260, %v27, 0.0
    %v306 = vsel %vm261, %v28, 0.0
    %v307 = vsel %vm262, %v29, 0.0
    %v308 = vsel %vm263, %v30, 0.0
    %v309 = vsel %vm264, %v31, 0.0
    %v310 = vsel %vm265, %v32, 0.0
    %v311 = vsel %vm266, %v33, 0.0
    %v312 = vsel %vm267, %v34, 0.0
    %v313 = vsel %vm268, %v35, 0.0
    %v314 = vsel %vm269, %v36, 0.0
    %v315 = vsel %vm270, %v37, 0.0
    %v316 = vsel %vm271, %v38, 0.0
    %v317 = vsel %vm272, %v39, 0.0
    %v318 = vsel %vm273, %v40, 0.0
    %v319 = vsel %vm274, %v41, 0.0
    %v320 = vsel %vm275, %v42, 0.0
    %v321 = vsel %vm276, %v43, 0.0
    %v322 = vsel %vm277, %v44, 0.0
    %v323 = vsel %vm278, %v45, 0.0
    %v324 = vsel %vm279, %v46, 0.0
    %v325 = vsel %vm280, %v47, 0.0
    %v326 = vsel %vm281, %v48, 0.0
    %v327 = vsel %vm282, %v49, 0.0
    %v328 = vsel %vm283, %v50, 0.0
    %v329 = vsel %vm284, %v51, 0.0
    %v330 = vsel %vm285, %v52, 0.0
    %v331 = vsel %vm286, %v53, 0.0
    %v332 = vsel %vm287, %v54, 0.0
    %v333 = vsel %vm288, %v55, 0.0
    %v334 = vsel %vm289, %v56, 0.0
    %v335 = vsel %vm290, %v57, 0.0
    %v336 = vsel %vm291, %v58, 0.0
    %v337 = vsel %vm292, %v59, 0.0
    %v338 = vsel %vm293, %v60, 0.0
    %v339 = vsel %vm294, %v61, 0.0
    %v340 = vsel %vm295, %v62, 0.0
    %v341 = vsel %vm296, %v63, 0.0
    %v342 = vsel %vm297, %v64, 0.0
    %v343 = vsel %vm298, %v65, 0.0
    %v344 = vsel %vm299, %v66, 0.0
    %v345 = vsel %vm300, %v67, 0.0
    %v346 = vsel %vm301, %v68, 0.0
    %v347 = vsel %vm302, %v69, 0.0
    %v348 = vadd.f32 %v303, %v304
    %v349 = vadd.f32 %v348, %v305
    %v350 = vadd.f32 %v349, %v306
    %v351 = vadd.f32 %v350, %v307
    %v352 = vadd.f32 %v351, %v308
    %v353 = vadd.f32 %v352, %v309
    %v354 = vadd.f32 %v353, %v310
    %v355 = vadd.f32 %v354, %v311
    %v356 = vadd.f32 %v355, %v312
    %v357 = vadd.f32 %v356, %v313
    %v358 = vadd.f32 %v357, %v314
    %v359 = vadd.f32 %v358, %v315
    %v360 = vadd.f32 %v359, %v316
    %v361 = vadd.f32 %v360, %v317
    %v362 = vadd.f32 %v361, %v318
    %v363 = vadd.f32 %v362, %v319
    %v364 = vadd.f32 %v363, %v320
    %v365 = vadd.f32 %v364, %v321
    %v366 = vadd.f32 %v365, %v322
    %v367 = vadd.f32 %v366, %v323
    %v368 = vadd.f32 %v367, %v324
    %v369 = vadd.f32 %v368, %v325
    %v370 = vadd.f32 %v369, %v326
    %v371 = vadd.f32 %v370, %v327
    %v372 = vadd.f32 %v371, %v328
    %v373 = vadd.f32 %v372, %v329
    %v374 = vadd.f32 %v373, %v330
    %v375 = vadd.f32 %v374, %v331
    %v376 = vadd.f32 %v375, %v332
    %v377 = vadd.f32 %v376, %v333
    %v378 = vadd.f32 %v377, %v334
    %v379 = vadd.f32 %v378, %v335
    %v380 = vadd.f32 %v379, %v336
    %v381 = vadd.f32 %v380, %v337
    %v382 = vadd.f32 %v381, %v338
    %v383 = vadd.f32 %v382, %v339
    %v384 = vadd.f32 %v383, %v340
    %v385 = vadd.f32 %v384, %v341
    %v386 = vadd.f32 %v385, %v342
    %v387 = vadd.f32 %v386, %v343
    %v388 = vadd.f32 %v387, %v344
    %v389 = vadd.f32 %v388, %v345
    %v390 = vadd.f32 %v389, %v346
    %v391 = vsel %vm204, %v347, 0.0
    %v392 = vadd.f32 %v390, %v391
    %393 = vadd.xlane.f32.xlu0 %v392
    %v394 = vpop.xlane.xlu0 %393
    %v395 = vlog2.pop %v208
    %v396 = vmul.f32 %v395, 0.6931472
    %v397 = vsub.f32 %v394, %v396
    %s398 = smul.u32 0, 8
    %v399 = vlaneseq
    %v400 = vshrl.u32 %v399, 7
    %v401 = vstv %s398
    %v402 = vadd.s32 %v401, %v400
    %vm403 = vcmp.lt.s32.totalorder %v402, 8
    %v404 = vsel %vm403, %v397, 0.0
    %vm405 = vcmask 7168
    %406 = vst.msk [vmem:[%s2] sm:$0xff] %vm405, %v404
    // Predicated region
    $region14: #{tpu_custom_call.1} parent=1 // pred_check
      _
    $region15: #{tpu_custom_call.1} parent=1 // pred_check_branch
      %408 = sbr.rel (0) target = $region17
    $region16: #{tpu_custom_call.1} parent=1 // pred_region
      _
    $region17: #{tpu_custom_call.1} parent=1 // pred_fallthru
      _
    // Predicated region
    $region18: #{tpu_custom_call.1} parent=1 // pred_check
      _
    $region19: #{tpu_custom_call.1} parent=1 // pred_check_branch
      %410 = sbr.rel (0) target = $region21
    $region20: #{tpu_custom_call.1} parent=1 // pred_region
      _
    $region21: #{tpu_custom_call.1} parent=1 // pred_fallthru
      _
    %411 = vsyncpa [#allocation3], 1

</llo_original>
